<compile_context>
chip_gen: v7x
topology: tpu7x:2x2x1
jax: 0.10.0
libtpu: 0.0.40
codegen_flags: <defaults>
</compile_context>

<pallas_src>
import jax
import jax.numpy as jnp
from jax.experimental import pallas as pl
from jax.experimental.pallas import tpu as pltpu

_LANE = 128
# 2048 rows x 128 lanes x 4 B = 1 MiB per f32 channel plane per grid step.
# (3 inputs + 1 output) x double-buffering ~ 8 MiB: fits default scoped VMEM
# on v5e (16 MiB), v6e (32 MiB) and v7x (32 MiB).
_MAX_ROWS_TILE = 2048


def _m_matrix(L):
    """Equivalent of MMatrix.forward: (B, 9) -> (B, 4, 4) float32 (reference only)."""
    c1, c2, c3, c4, c5 = 0.429043, 0.511664, 0.743152, 0.886227, 0.247708
    L = L.astype(jnp.float32)
    row0 = jnp.stack([c1 * L[:, 8], c1 * L[:, 4], c1 * L[:, 7], c2 * L[:, 3]], axis=1)
    row1 = jnp.stack([c1 * L[:, 4], -c1 * L[:, 8], c1 * L[:, 5], c2 * L[:, 1]], axis=1)
    row2 = jnp.stack([c1 * L[:, 7], c1 * L[:, 5], c3 * L[:, 6], c2 * L[:, 2]], axis=1)
    row3 = jnp.stack([c2 * L[:, 3], c2 * L[:, 1], c2 * L[:, 2],
                      c4 * L[:, 0] - c5 * L[:, 6]], axis=1)
    return jnp.stack([row0, row1, row2, row3], axis=1)


def _m_coeffs(L):
    """Fold M's symmetry: (B, 9) -> (B, 10) f32.

    Order: [m00, m11, m22, 2*m01, 2*m02, 2*m12, 2*m03, 2*m13, 2*m23, m33]
    so that n^T M n = m00*nx^2 + m11*ny^2 + m22*nz^2
                    + 2*m01*nx*ny + 2*m02*nx*nz + 2*m12*ny*nz
                    + 2*m03*nx + 2*m13*ny + 2*m23*nz + m33.
    """
    c1, c2, c3, c4, c5 = 0.429043, 0.511664, 0.743152, 0.886227, 0.247708
    L = L.astype(jnp.float32)
    m00 = c1 * L[:, 8]
    m11 = -c1 * L[:, 8]
    m22 = c3 * L[:, 6]
    m01 = c1 * L[:, 4]
    m02 = c1 * L[:, 7]
    m12 = c1 * L[:, 5]
    m03 = c2 * L[:, 3]
    m13 = c2 * L[:, 1]
    m23 = c2 * L[:, 2]
    m33 = c4 * L[:, 0] - c5 * L[:, 6]
    return jnp.stack(
        [m00, m11, m22,
         2.0 * m01, 2.0 * m02, 2.0 * m12,
         2.0 * m03, 2.0 * m13, 2.0 * m23,
         m33],
        axis=1,
    )


def _shade_kernel(coef_ref, n_ref, o_ref):
    # coef_ref: SMEM (B, 10)             -- folded M coefficients (scalar prefetch)
    # n_ref:    VMEM (3, rows_tile, 128) -- nx/ny/nz planes, lane-dense
    # o_ref:    VMEM (rows_tile, 128)    -- per-pixel shading (f32)
    b = pl.program_id(0)

    # Load each channel plane; upcast in-register (input may be bf16 etc.).
    nx = n_ref[0].astype(jnp.float32)          # (rows_tile, 128)
    ny = n_ref[1].astype(jnp.float32)
    nz = n_ref[2].astype(jnp.float32)

    m00 = coef_ref[b, 0]
    m11 = coef_ref[b, 1]
    m22 = coef_ref[b, 2]
    m01_2 = coef_ref[b, 3]
    m02_2 = coef_ref[b, 4]
    m12_2 = coef_ref[b, 5]
    m03_2 = coef_ref[b, 6]
    m13_2 = coef_ref[b, 7]
    m23_2 = coef_ref[b, 8]
    m33 = coef_ref[b, 9]

    # Horner-style grouping: ~18 VALU ops per vreg instead of ~24.
    s = (nx * (m00 * nx + m01_2 * ny + m02_2 * nz + m03_2)
         + ny * (m11 * ny + m12_2 * nz + m13_2)
         + nz * (m22 * nz + m23_2)
         + m33)

    o_ref[...] = s


def _choose_tiling(rows, batch, sublane):
    """Pick (rows_tile, n_tiles, rows_pad) for the 128-lane pixel-row axis.

    Strongly prefers an exact tiling (rows_pad == rows) so no padded HBM copy
    of the normals and no output tail-slice pass are needed.  `sublane` is 8
    for 32-bit normals, 16 for 16-bit (bf16) normals.
    """
    cap = _MAX_ROWS_TILE

    def best_divisor(n, limit):
        # Largest divisor of n that is a multiple of `sublane` and <= limit.
        best = None
        d = sublane
        hi = min(n, limit)
        while d <= hi:
            if n % d == 0:
                best = d
            d += sublane
        return best

    if rows <= cap:
        # Whole row axis fits one block (full-dim block is always layout-legal
        # even when rows % sublane != 0).  If batch == 1, try to split into
        # >= 2 tiles so both v7x TensorCores get work on the "parallel" axes.
        if batch < 2:
            d = best_divisor(rows, rows // 2)
            if d is not None and d * 8 >= rows:   # avoid exploding step count
                return d, rows // d, rows
        return rows, 1, rows

    d = best_divisor(rows, cap)
    if d is not None and d * 8 >= cap:            # reasonably large exact tile
        return d, rows // d, rows

    # Rare fallback (ragged row count with no usable divisor): padded path.
    # Keep the tile modest so the pad overhead stays below one tile.
    tile = 512
    n_tiles = pl.cdiv(rows, tile)
    return tile, n_tiles, n_tiles * tile


def wasp_shade_renderer(light, normals):
    """light: (B, 9), normals: (B, 3, W, H) -> shading: (B, 1, W, H) float32.

    Normals may be f32 or bf16; bf16 halves HBM read traffic (the kernel
    upcasts in-register) while the output stays f32.
    """
    B, C, W, H = normals.shape
    assert C == 3, "normals must have 3 channels (nx, ny, nz)"
    WH = W * H
    itemsize = jnp.dtype(normals.dtype).itemsize
    sublane = 16 if itemsize < 4 else 8

    rows = pl.cdiv(WH, _LANE)                      # 128-lane rows needed
    rows_tile, n_tiles, rows_pad = _choose_tiling(rows, B, sublane)
    WH_pad = rows_pad * _LANE

    coeffs = _m_coeffs(light)                      # (B, 10) f32, tiny glue

    # Keep native dtype; pad pixel axis only when unavoidable (padding pixels
    # shade to m33 and are sliced away below).
    n_flat = normals.reshape(B, 3, WH)
    if WH_pad != WH:
        n_flat = jnp.pad(n_flat, ((0, 0), (0, 0), (0, WH_pad - WH)))
    n_tiled = n_flat.reshape(B, 3, rows_pad, _LANE)

    n_pixels = B * rows_pad * _LANE
    cost = pl.CostEstimate(
        flops=19 * n_pixels,
        transcendentals=0,
        bytes_accessed=3 * n_pixels * itemsize + 4 * n_pixels + B * 10 * 4,
    )

    out = pl.pallas_call(
        _shade_kernel,
        out_shape=jax.ShapeDtypeStruct((B, rows_pad, _LANE), jnp.float32),
        grid_spec=pltpu.PrefetchScalarGridSpec(
            num_scalar_prefetch=1,
            grid=(B, n_tiles),
            in_specs=[
                pl.BlockSpec((None, 3, rows_tile, _LANE),
                             lambda b, t, coef: (b, 0, t, 0)),
            ],
            out_specs=pl.BlockSpec((None, rows_tile, _LANE),
                                   lambda b, t, coef: (b, t, 0)),
        ),
        compiler_params=pltpu.CompilerParams(
            dimension_semantics=("parallel", "parallel")),
        cost_estimate=cost,
    )(coeffs, n_tiled)

    if WH_pad == WH:
        return out.reshape(B, 1, W, H)
    return out.reshape(B, WH_pad)[:, :WH].reshape(B, 1, W, H)


def _reference(light, normals):
    """Pure-JAX reference mirroring the PyTorch forward."""
    B, _, W, H = normals.shape
    ones = jnp.ones((B, 1, W, H), jnp.float32)
    hN = jnp.concatenate([normals.astype(jnp.float32), ones], axis=1)  # (B,4,W,H)
    hN = hN.reshape(B, 4, W * H)                                       # (B,4,WH)
    M = _m_matrix(light)                                               # (B,4,4)
    s = jnp.einsum('bip,bij,bjp->bp', hN, M, hN)
    return s.reshape(B, 1, W, H)


if __name__ == "__main__":
    key = jax.random.PRNGKey(0)
    k1, k2 = jax.random.split(key)
    B, W, H = 2, 16, 16
    light = jax.random.normal(k1, (B, 9), dtype=jnp.float32)
    normals = jax.random.normal(k2, (B, 3, W, H), dtype=jnp.float32)

    shading = wasp_shade_renderer(light, normals)
    shading = jax.block_until_ready(shading)

    ref = _reference(light, normals)
    assert shading.shape == (B, 1, W, H)
    assert jnp.allclose(shading, ref, rtol=1e-5, atol=1e-5), "mismatch vs reference"

    print("KERNEL_OK")
</pallas_src>

<mosaic_0001>
module attributes {stable_mosaic.version = 11 : i64} {
  func.func @_shade_kernel(%arg0: i32, %arg1: i32, %arg2: memref<2x10xf32, #tpu.memory_space<smem>>, %arg3: memref<1x3x2x128xf32, #tpu.memory_space<vmem>>, %arg4: memref<1x2x128xf32, #tpu.memory_space<vmem>>) attributes {dimension_semantics = [#tpu.dimension_semantics<parallel>, #tpu.dimension_semantics<parallel>], iteration_bounds = array<i64: 2, 1>, scalar_prefetch = 1 : i64, scratch_operands = 0 : i64, tpu.core_type = #tpu.core_type<tc>, window_params = [{transform_indices = @transform_0, window_bounds = array<i64: 1, 3, 2, 128>}, {transform_indices = @transform_1, window_bounds = array<i64: 1, 2, 128>}]} {
    %c0 = arith.constant 0 : index
    %c0_0 = arith.constant 0 : index
    %c0_1 = arith.constant 0 : index
    %c0_2 = arith.constant 0 : index
    %0 = vector.load %arg3[%c0, %c0_0, %c0_1, %c0_2] : memref<1x3x2x128xf32, #tpu.memory_space<vmem>>, vector<1x1x2x128xf32>
    %1 = vector.shape_cast %0 : vector<1x1x2x128xf32> to vector<2x128xf32>
    %c0_3 = arith.constant 0 : index
    %c1 = arith.constant 1 : index
    %c0_4 = arith.constant 0 : index
    %c0_5 = arith.constant 0 : index
    %2 = vector.load %arg3[%c0_3, %c1, %c0_4, %c0_5] : memref<1x3x2x128xf32, #tpu.memory_space<vmem>>, vector<1x1x2x128xf32>
    %3 = vector.shape_cast %2 : vector<1x1x2x128xf32> to vector<2x128xf32>
    %c0_6 = arith.constant 0 : index
    %c2 = arith.constant 2 : index
    %c0_7 = arith.constant 0 : index
    %c0_8 = arith.constant 0 : index
    %4 = vector.load %arg3[%c0_6, %c2, %c0_7, %c0_8] : memref<1x3x2x128xf32, #tpu.memory_space<vmem>>, vector<1x1x2x128xf32>
    %5 = vector.shape_cast %4 : vector<1x1x2x128xf32> to vector<2x128xf32>
    %6 = arith.index_cast %arg0 : i32 to index
    %c0_9 = arith.constant 0 : index
    %7 = memref.load %arg2[%6, %c0_9] : memref<2x10xf32, #tpu.memory_space<smem>>
    %8 = arith.index_cast %arg0 : i32 to index
    %c1_10 = arith.constant 1 : index
    %9 = memref.load %arg2[%8, %c1_10] : memref<2x10xf32, #tpu.memory_space<smem>>
    %10 = arith.index_cast %arg0 : i32 to index
    %c2_11 = arith.constant 2 : index
    %11 = memref.load %arg2[%10, %c2_11] : memref<2x10xf32, #tpu.memory_space<smem>>
    %12 = arith.index_cast %arg0 : i32 to index
    %c3 = arith.constant 3 : index
    %13 = memref.load %arg2[%12, %c3] : memref<2x10xf32, #tpu.memory_space<smem>>
    %14 = arith.index_cast %arg0 : i32 to index
    %c4 = arith.constant 4 : index
    %15 = memref.load %arg2[%14, %c4] : memref<2x10xf32, #tpu.memory_space<smem>>
    %16 = arith.index_cast %arg0 : i32 to index
    %c5 = arith.constant 5 : index
    %17 = memref.load %arg2[%16, %c5] : memref<2x10xf32, #tpu.memory_space<smem>>
    %18 = arith.index_cast %arg0 : i32 to index
    %c6 = arith.constant 6 : index
    %19 = memref.load %arg2[%18, %c6] : memref<2x10xf32, #tpu.memory_space<smem>>
    %20 = arith.index_cast %arg0 : i32 to index
    %c7 = arith.constant 7 : index
    %21 = memref.load %arg2[%20, %c7] : memref<2x10xf32, #tpu.memory_space<smem>>
    %22 = arith.index_cast %arg0 : i32 to index
    %c8 = arith.constant 8 : index
    %23 = memref.load %arg2[%22, %c8] : memref<2x10xf32, #tpu.memory_space<smem>>
    %24 = arith.index_cast %arg0 : i32 to index
    %c9 = arith.constant 9 : index
    %25 = memref.load %arg2[%24, %c9] : memref<2x10xf32, #tpu.memory_space<smem>>
    %26 = vector.broadcast %7 : f32 to vector<2x128xf32>
    %27 = arith.mulf %26, %1 : vector<2x128xf32>
    %28 = vector.broadcast %13 : f32 to vector<2x128xf32>
    %29 = arith.mulf %28, %3 : vector<2x128xf32>
    %30 = arith.addf %27, %29 : vector<2x128xf32>
    %31 = vector.broadcast %15 : f32 to vector<2x128xf32>
    %32 = arith.mulf %31, %5 : vector<2x128xf32>
    %33 = arith.addf %30, %32 : vector<2x128xf32>
    %34 = vector.broadcast %19 : f32 to vector<2x128xf32>
    %35 = arith.addf %33, %34 : vector<2x128xf32>
    %36 = arith.mulf %1, %35 : vector<2x128xf32>
    %37 = vector.broadcast %9 : f32 to vector<2x128xf32>
    %38 = arith.mulf %37, %3 : vector<2x128xf32>
    %39 = vector.broadcast %17 : f32 to vector<2x128xf32>
    %40 = arith.mulf %39, %5 : vector<2x128xf32>
    %41 = arith.addf %38, %40 : vector<2x128xf32>
    %42 = vector.broadcast %21 : f32 to vector<2x128xf32>
    %43 = arith.addf %41, %42 : vector<2x128xf32>
    %44 = arith.mulf %3, %43 : vector<2x128xf32>
    %45 = arith.addf %36, %44 : vector<2x128xf32>
    %46 = vector.broadcast %11 : f32 to vector<2x128xf32>
    %47 = arith.mulf %46, %5 : vector<2x128xf32>
    %48 = vector.broadcast %23 : f32 to vector<2x128xf32>
    %49 = arith.addf %47, %48 : vector<2x128xf32>
    %50 = arith.mulf %5, %49 : vector<2x128xf32>
    %51 = arith.addf %45, %50 : vector<2x128xf32>
    %52 = vector.broadcast %25 : f32 to vector<2x128xf32>
    %53 = arith.addf %51, %52 : vector<2x128xf32>
    %c0_12 = arith.constant 0 : index
    %c0_13 = arith.constant 0 : index
    %c0_14 = arith.constant 0 : index
    %54 = vector.load %arg4[%c0_12, %c0_13, %c0_14] : memref<1x2x128xf32, #tpu.memory_space<vmem>>, vector<1x2x128xf32>
    %55 = vector.shape_cast %54 : vector<1x2x128xf32> to vector<2x128xf32>
    %56 = vector.shape_cast %53 : vector<2x128xf32> to vector<1x2x128xf32>
    tpu.vector_store %arg4[%c0_12, %c0_13, %c0_14], %56 {strides = array<i32>} : memref<1x2x128xf32, #tpu.memory_space<vmem>>, vector<1x2x128xf32>,
    return
  }
  func.func @transform_0(%arg0: i32, %arg1: i32, %arg2: memref<2x10xf32, #tpu.memory_space<smem>>) -> (i32, i32, i32, i32) {
    %c0_i32 = arith.constant 0 : i32
    %c0_i32_0 = arith.constant 0 : i32
    %c0_i32_1 = arith.constant 0 : i32
    return %arg0, %c0_i32, %arg1, %c0_i32_0 : i32, i32, i32, i32
  }
  func.func @transform_1(%arg0: i32, %arg1: i32, %arg2: memref<2x10xf32, #tpu.memory_space<smem>>) -> (i32, i32, i32) {
    %c0_i32 = arith.constant 0 : i32
    %c0_i32_0 = arith.constant 0 : i32
    return %arg0, %arg1, %c0_i32 : i32, i32, i32
  }
}

</mosaic_0001>

<llo_original>
// kernel: tpu_custom_call.1
$region0: #{tpu_custom_call.1}
  #allocation0 [shape = 'u32[]', space=smem, size = 0x4, offset = 0x4, fixed_abs, tag = 'smem constant byte address 0x4 - core index']
  #allocation1 [shape = 'u32[144,128]{1,0:T(1,128)}', space=vmem, size = 0x12000, scoped, tag = 'internal scratch']
  #allocation2 [shape = 's32[1]{0}', space=sflag, size = 0x4, scoped, tag = 'scoped memory for tpu_custom_call.1']
  #allocation3 [shape = 'u8[1024]{0}', space=smem, size = 0x400, scoped, tag = 'prefetched SMEM operand 0']
  %s0 = inlined_call_operand.hbm [shape: f32[2,10], index: 0, kind: input, shape index: {}]
  %s1 = inlined_call_operand.hbm [shape: f32[2,3,2,128], index: 1, kind: input, shape index: {}]
  %s2 = inlined_call_operand.hbm [shape: f32[2,2,128], index: 2, kind: output, shape index: {}]
  %s3 = sld [smem:[#allocation0]]
  $region41: #{tpu_custom_call.1} parent=0
    _
  %s5 = ssub.s32 1, %s3
  %s6 = scalar_select 0, %s5, %s3
  %8 = dma.hbm_to_smem %s0, 32, [#allocation3], [#allocation2]
  %9 = dma.done [#allocation2], 32
  %10 = sfence
  $region1: #{tpu_custom_call.1} parent=0
    #allocation4 [shape = 'u8[6144]{0}', space=vmem, size = 0x1800, scoped, tag = 'input window, operand 1']
    #allocation5 [shape = 's32[2]{0}', space=sflag, size = 0x8, scoped, tag = 'scoped memory for tpu_custom_call.1']
    #allocation6 [shape = 's32[2]{0}', space=sflag, size = 0x8, scoped, tag = 'scoped memory for tpu_custom_call.1']
    #allocation7 [shape = 'u8[2048]{0}', space=vmem, size = 0x800, scoped, tag = 'output window, operand 0']
    %11 = vsyncpa [#allocation5], 0
    %s12 = scalar_lea.sflag [#allocation5], 1
    %13 = vsyncpa %s12, 0
    %14 = vsyncpa [#allocation6], 0
    %s15 = scalar_lea.sflag [#allocation6], 1
    %16 = vsyncpa %s15, 0
    loop: start=0, step=1, limit=4
    $region2: #{tpu_custom_call.1} parent=1 // loop_pre_header
      _
    $region3: #{tpu_custom_call.1} parent=1 // loop_header
      %s18 = sphi 0, %s22
      %p19 = scmp.ge.s32.totalorder %s18, 4
      %s25 = sphi 0, %s37
      %s26 = sphi 0, %s33
      %s27 = sphi 0, %s25
      %s28 = sphi 0, %s26
      %s29 = sphi 0, %s27
      %s30 = sphi 0, %s28
      %s42 = sphi 0, %s44
      %s45 = sphi 0, %s42
      %s46 = sphi 0, %s45
      %s62 = sphi 0, %s46
      %s70 = sphi 0, %s72
      %s73 = sphi 0, %s70
      %s74 = sphi 0, %s73
      %s90 = sphi 0, %s74
    $region4: #{tpu_custom_call.1} parent=1 // loop_header_branch
      %21 = sbr.rel (%p19) target = $region8
    $region5: #{tpu_custom_call.1} parent=1 // loop_body
      %s23 = ssub.s32 %s18, 1
      %s24 = ssub.s32 %s18, 2
      %s31 = sadd.s32 1, %s26
      %p32 = scmp.ge.s32.totalorder %s31, 1
      %s33 = scalar_select %p32, 0, %s31
      %s34 = sadd.s32 1, %s25
      %s35 = scalar_select %p32, %s34, %s25
      %p36 = scmp.ge.s32.totalorder %s35, 2
      %s37 = scalar_select %p36, 0, %s35
      %s38 = ssub.s32 %s25, %s37
      %s39 = ssub.s32 %s26, %s33
      %s40 = sor.u32 %s38, %s39
      %p41 = scmp.eq.s32.totalorder %s40, 0
      %s43 = sadd.s32 %s42, 1
      %s44 = scalar_select %p41, %s42, %s43
      %p47 = pneg %p41
      %p48 = scmp.eq.s32.totalorder %s18, 1
      %p49 = por %p47, %p48
      %p50 = scmp.ne.s32.totalorder %s42, %s45
      %p51 = scmp.eq.s32.totalorder %s18, 0
      %p52 = por %p50, %p51
      %p53 = scmp.ne.s32.totalorder %s42, %s45
      %p54 = scmp.eq.s32.totalorder %s23, 1
      %p55 = por %p53, %p54
      %p56 = scmp.ne.s32.totalorder %s45, %s46
      %p57 = scmp.eq.s32.totalorder %s23, 0
      %p58 = por %p56, %p57
      %p59 = scmp.ne.s32.totalorder %s45, %s46
      %p60 = scmp.eq.s32.totalorder %s24, 1
      %p61 = por %p59, %p60
      %p63 = scmp.ne.s32.totalorder %s46, %s62
      %p64 = scmp.eq.s32.totalorder %s24, 0
      %p65 = por %p63, %p64
      %s66 = ssub.s32 %s25, %s37
      %s67 = ssub.s32 %s26, %s33
      %s68 = sor.u32 %s66, %s67
      %p69 = scmp.eq.s32.totalorder %s68, 0
      %s71 = sadd.s32 %s70, 1
      %s72 = scalar_select %p69, %s70, %s71
      %p75 = pneg %p69
      %p76 = scmp.eq.s32.totalorder %s18, 1
      %p77 = por %p75, %p76
      %p78 = scmp.ne.s32.totalorder %s70, %s73
      %p79 = scmp.eq.s32.totalorder %s18, 0
      %p80 = por %p78, %p79
      %p81 = scmp.ne.s32.totalorder %s70, %s73
      %p82 = scmp.eq.s32.totalorder %s23, 1
      %p83 = por %p81, %p82
      %p84 = scmp.ne.s32.totalorder %s73, %s74
      %p85 = scmp.eq.s32.totalorder %s23, 0
      %p86 = por %p84, %p85
      %p87 = scmp.ne.s32.totalorder %s73, %s74
      %p88 = scmp.eq.s32.totalorder %s24, 1
      %p89 = por %p87, %p88
      %p91 = scmp.ne.s32.totalorder %s74, %s90
      %p92 = scmp.eq.s32.totalorder %s24, 0
      %p93 = por %p91, %p92
      %p94 = scmp.le.s32.totalorder 1, %s18
      %p95 = scmp.lt.s32.totalorder %s18, 3
      %p96 = pnand %p94, %p95
      %p97 = pneg %p96
      // Predicated region
      $region9: #{tpu_custom_call.1} parent=5 // pred_check
        _
      $region10: #{tpu_custom_call.1} parent=5 // pred_check_branch
        %99 = sbr.rel (%p96) target = $region12
      $region11: #{tpu_custom_call.1} parent=5 // pred_region
        %s100 = ssub.s32 %s18, 1
      $region12: #{tpu_custom_call.1} parent=5 // pred_fallthru
        _
      %p101 = scmp.lt.s32.totalorder %s18, 2
      // Predicated region
      $region13: #{tpu_custom_call.1} parent=5 // pred_check
        %p102 = pneg %p101
      $region14: #{tpu_custom_call.1} parent=5 // pred_check_branch
        %104 = sbr.rel (%p102) target = $region16
      $region15: #{tpu_custom_call.1} parent=5 // pred_region
        // Predicated region
        $region17: #{tpu_custom_call.1} parent=15 // pred_check
          %p105 = pneg %p52
        $region18: #{tpu_custom_call.1} parent=15 // pred_check_branch
          %107 = sbr.rel (%p105) target = $region20
        $region19: #{tpu_custom_call.1} parent=15 // pred_region
          %s108 = sand.u32 %s42, 1
          %s109 = scalar_lea.sflag [#allocation5], %s108
          %s110 = sand.u32 %s42, 1
          %s111 = smul.addr %s110, 6
          %s112 = scalar_lea.vmem [#allocation4], %s111
          %s114 = ssub.s32 96, 96
          %115 = vsyncadd %s109, %s114
          %s116 = smul.addr %s25, 3
          %s117 = sadd.s32 %s26, %s116
          %s118 = smul.addr %s117, 32
          %s119 = scalar_lea.hbm %s1, %s118
          %s120 = sshll.u32 %s112, 4
          %s121 = int_to_ptr.vmem [resolvable:$true] %s120
          %126 = dma.hbm_to_vmem [thread:$0]  %s119, 96, %s121, %s109, 32, 32, 2
        $region20: #{tpu_custom_call.1} parent=15 // pred_fallthru
          _
      $region16: #{tpu_custom_call.1} parent=5 // pred_fallthru
        _
      %p127 = scmp.le.s32.totalorder 1, %s18
      %p128 = scmp.lt.s32.totalorder %s18, 3
      %p129 = pnand %p127, %p128
      %p130 = pneg %p129
      // Predicated region
      $region21: #{tpu_custom_call.1} parent=5 // pred_check
        _
      $region22: #{tpu_custom_call.1} parent=5 // pred_check_branch
        %132 = sbr.rel (%p129) target = $region24
      $region23: #{tpu_custom_call.1} parent=5 // pred_region
        %s133 = ssub.s32 %s18, 1
        %s134 = sand.u32 %s45, 1
        %s135 = scalar_lea.sflag [#allocation5], %s134
        %s136 = sand.u32 %s45, 1
        %s137 = smul.addr %s136, 6
        %s138 = scalar_lea.vmem [#allocation4], %s137
        // Predicated region
        $region25: #{tpu_custom_call.1} parent=23 // pred_check
          %p139 = pneg %p58
        $region26: #{tpu_custom_call.1} parent=23 // pred_check_branch
          %141 = sbr.rel (%p139) target = $region28
        $region27: #{tpu_custom_call.1} parent=23 // pred_region
          %142 = dma.done %s135, 96
        $region28: #{tpu_custom_call.1} parent=23 // pred_fallthru
          _
        %s143 = sand.u32 %s45, 1
        %s144 = scalar_lea.sflag [#allocation5], %s143
        %s145 = sand.u32 %s45, 1
        %s146 = smul.addr %s145, 6
        %s147 = scalar_lea.vmem [#allocation4], %s146
        %p148 = pneg %p58
        %p149 = pneg %p55
        %p150 = pneg %p86
        %p151 = pneg %p83
        %s152 = sand.u32 %s73, 1
        %s153 = scalar_lea.sflag [#allocation6], %s152
        %s154 = sand.u32 %s73, 1
        %s155 = smul.addr %s154, 2
        %s156 = scalar_lea.vmem [#allocation7], %s155
        %v157 = vld [vmem:[%s138] sm:$0x3]
        %s158 = scalar_lea.vmem %s138, 2 [#allocation4]
        %v159 = vld [vmem:[%s158] sm:$0x3]
        %s160 = scalar_lea.vmem %s138, 4 [#allocation4]
        %v161 = vld [vmem:[%s160] sm:$0x3]
        %s162 = smul.u32 %s27, 128
        %s163 = sld [smem:[#allocation3 + %s162]]
        %s164 = sadd.s32 %s162, 1
        %s165 = sld [smem:[#allocation3 + %s164]]
        %s166 = sadd.s32 %s162, 2
        %s167 = sld [smem:[#allocation3 + %s166]]
        %s168 = sadd.s32 %s162, 3
        %s169 = sld [smem:[#allocation3 + %s168]]
        %s170 = sadd.s32 %s162, 4
        %s171 = sld [smem:[#allocation3 + %s170]]
        %s172 = sadd.s32 %s162, 5
        %s173 = sld [smem:[#allocation3 + %s172]]
        %s174 = sadd.s32 %s162, 6
        %s175 = sld [smem:[#allocation3 + %s174]]
        %s176 = sadd.s32 %s162, 7
        %s177 = sld [smem:[#allocation3 + %s176]]
        %s178 = sadd.s32 %s162, 8
        %s179 = sld [smem:[#allocation3 + %s178]]
        %s180 = sadd.s32 %s162, 9
        %s181 = sld [smem:[#allocation3 + %s180]]
        %v182 = vstv %s163
        %v183 = vmul.f32 %v182, %v157
        %v184 = vstv %s169
        %v185 = vmul.f32 %v184, %v159
        %v186 = vadd.f32 %v183, %v185
        %v187 = vstv %s171
        %v188 = vmul.f32 %v187, %v161
        %v189 = vadd.f32 %v186, %v188
        %v190 = vstv %s175
        %v191 = vadd.f32 %v189, %v190
        %v192 = vmul.f32 %v157, %v191
        %v193 = vstv %s165
        %v194 = vmul.f32 %v193, %v159
        %v195 = vstv %s173
        %v196 = vmul.f32 %v195, %v161
        %v197 = vadd.f32 %v194, %v196
        %v198 = vstv %s177
        %v199 = vadd.f32 %v197, %v198
        %v200 = vmul.f32 %v159, %v199
        %v201 = vadd.f32 %v192, %v200
        %v202 = vstv %s167
        %v203 = vmul.f32 %v202, %v161
        %v204 = vstv %s179
        %v205 = vadd.f32 %v203, %v204
        %v206 = vmul.f32 %v161, %v205
        %v207 = vadd.f32 %v201, %v206
        %v208 = vstv %s181
        %v209 = vadd.f32 %v207, %v208
        %210 = vst [vmem:[%s156] sm:$0x3] %v209
        %s211 = sand.u32 %s73, 1
        %s212 = scalar_lea.sflag [#allocation6], %s211
        %s213 = sand.u32 %s73, 1
        %s214 = smul.addr %s213, 2
        %s215 = scalar_lea.vmem [#allocation7], %s214
        // Predicated region
        $region29: #{tpu_custom_call.1} parent=23 // pred_check
          %p216 = pneg %p83
        $region30: #{tpu_custom_call.1} parent=23 // pred_check_branch
          %218 = sbr.rel (%p216) target = $region32
        $region31: #{tpu_custom_call.1} parent=23 // pred_region
          %s220 = ssub.s32 32, 32
          %221 = vsyncadd %s212, %s220
          %s222 = sadd.s32 %s28, %s27
          %s223 = smul.addr %s222, 32
          %s224 = scalar_lea.hbm %s2, %s223
          %s226 = sshll.u32 %s215, 4
          %s227 = int_to_ptr.vmem [resolvable:$true] %s226
          %229 = dma.vmem_to_hbm [thread:$0]  %s227, 32, %s224, %s212
        $region32: #{tpu_custom_call.1} parent=23 // pred_fallthru
          _
      $region24: #{tpu_custom_call.1} parent=5 // pred_fallthru
        _
      %p230 = scmp.le.s32.totalorder 2, %s18
      // Predicated region
      $region33: #{tpu_custom_call.1} parent=5 // pred_check
        %p231 = pneg %p230
      $region34: #{tpu_custom_call.1} parent=5 // pred_check_branch
        %233 = sbr.rel (%p231) target = $region36
      $region35: #{tpu_custom_call.1} parent=5 // pred_region
        %s234 = ssub.s32 %s18, 2
        // Predicated region
        $region37: #{tpu_custom_call.1} parent=35 // pred_check
          %p235 = pneg %p89
        $region38: #{tpu_custom_call.1} parent=35 // pred_check_branch
          %237 = sbr.rel (%p235) target = $region40
        $region39: #{tpu_custom_call.1} parent=35 // pred_region
          %s238 = sand.u32 %s74, 1
          %s239 = scalar_lea.sflag [#allocation6], %s238
          %s240 = sand.u32 %s74, 1
          %s241 = smul.addr %s240, 2
          %s242 = scalar_lea.vmem [#allocation7], %s241
          %243 = dma.done %s239, 32
        $region40: #{tpu_custom_call.1} parent=35 // pred_fallthru
          _
      $region36: #{tpu_custom_call.1} parent=5 // pred_fallthru
        _
    $region6: #{tpu_custom_call.1} parent=1 // loop_footer
      %s22 = sadd.s32 1, %s18
    $region7: #{tpu_custom_call.1} parent=1 // loop_footer_branch
      %17 = sbr.rel target = $region3
    $region8: #{tpu_custom_call.1} parent=1 // loop_exit
      _
    %244 = vsyncpa [#allocation5], 1
    %s245 = scalar_lea.sflag [#allocation5], 1
    %246 = vsyncpa %s245, 1
    %247 = vsyncpa [#allocation6], 1
    %s248 = scalar_lea.sflag [#allocation6], 1
    %249 = vsyncpa %s248, 1

</llo_original>
